<compile_context>
chip_gen: v7x
topology: tpu7x:2x2x1
jax: 0.10.0
libtpu: 0.0.40
codegen_flags: <defaults>
</compile_context>

<pallas_src>
import jax
import jax.numpy as jnp
from jax.experimental import pallas as pl
from jax.experimental.pallas import tpu as pltpu

_LANE = 128
_SUBLANE = 8

# Set True on v6e/v7x to run the three dots with bf16 operands (f32 accumulate,
# f32 bias-add / tanh).  Slightly loosens numerics vs. the f32 reference.
USE_BF16_MATMUL = False


def _round_up(n, m):
    return ((n + m - 1) // m) * m


def _ppo_kernel(x_ref, w1_ref, w2_ref, wh_ref, b1_ref, b2_ref, bh_ref, out_ref):
    """shared_net (Linear->Tanh->Linear->Tanh) + fused [mean|value] head.

    Bias adds and tanh stay in f32 (v5e VPU/EUP have no bf16 datapath); matmul
    operand dtype follows the weight dtype (f32 or bf16, f32 accumulate)."""
    h1 = jnp.tanh(
        jnp.dot(x_ref[...], w1_ref[...], preferred_element_type=jnp.float32)
        + b1_ref[...]
    )
    h2 = jnp.tanh(
        jnp.dot(h1.astype(w2_ref.dtype), w2_ref[...],
                preferred_element_type=jnp.float32)
        + b2_ref[...]
    )
    # single lane-dense (TB, 128) store: cols [0:A]=mean, [A]=value, rest pad
    out_ref[...] = (
        jnp.dot(h2.astype(wh_ref.dtype), wh_ref[...],
                preferred_element_type=jnp.float32)
        + bh_ref[...]
    )


def _pick_batch_tile(B):
    """>=2 grid steps when possible (v7x megacore), 512-row cap, 8-row align."""
    if B <= _SUBLANE:
        return B
    half = -(-B // 2)
    return min(512, _round_up(half, _SUBLANE))


@jax.jit
def ppo_forward(x, packed):
    """Returns (mean, std_row, value); std_row is (1, A) = exp(log_std)."""
    B, in_dim = x.shape
    w1, w2, wh = packed["w1"], packed["w2"], packed["wh"]
    b1, b2, bh = packed["b1"], packed["b2"], packed["bh"]
    log_std = packed["log_std"]

    Hp = w1.shape[1]          # lane-padded hidden dim (multiple of 128)
    A = log_std.shape[1]      # action dim
    P = wh.shape[1]           # fused head width (multiple of 128)

    TB = _pick_batch_tile(B)
    grid = (pl.cdiv(B, TB),)

    resident_bytes = sum(int(a.size) * a.dtype.itemsize
                         for a in (w1, w2, wh, b1, b2, bh))
    # Large hidden configs: single-buffer the VMEM-resident weights/biases so
    # they do not get pointlessly double-buffered (halves resident footprint,
    # critical under v7x's 64 MiB VMEM).
    single_buffer_weights = resident_bytes > (8 << 20)

    def _resident(shape):
        if single_buffer_weights:
            return pl.BlockSpec(shape, lambda i: (0, 0),
                                pipeline_mode=pl.Buffered(1))
        return pl.BlockSpec(shape, lambda i: (0, 0))

    # VMEM estimate: double-buffered x / out tiles, weights (1x or 2x), plus
    # h1/h2 intermediates.  Only raise the scoped limit when actually needed.
    vmem_need = (2 * TB * in_dim * 4
                 + 2 * TB * P * 4
                 + (1 if single_buffer_weights else 2) * resident_bytes
                 + 4 * TB * Hp * 4)
    vmem_limit = None
    if vmem_need > (28 << 20):
        # TODO(synk): per-generation cap (v7x physical VMEM is only 64 MiB).
        vmem_limit = min(int(vmem_need * 5 // 4), 60 << 20)

    x = x.astype(w1.dtype)    # bf16 only when USE_BF16_MATMUL (no-op in f32)

    out = pl.pallas_call(
        _ppo_kernel,
        out_shape=jax.ShapeDtypeStruct((B, P), jnp.float32),
        grid=grid,
        in_specs=[
            pl.BlockSpec((TB, in_dim), lambda i: (i, 0)),  # x: batch-tiled, un-padded in_dim
            _resident((in_dim, Hp)),                       # w1 (resident)
            _resident((Hp, Hp)),                           # w2 (resident)
            _resident((Hp, P)),                            # fused head weight
            _resident((1, Hp)),                            # b1
            _resident((1, Hp)),                            # b2
            _resident((1, P)),                             # fused head bias
        ],
        out_specs=pl.BlockSpec((TB, P), lambda i: (i, 0)),
        compiler_params=pltpu.CompilerParams(
            dimension_semantics=("parallel",),             # megacore on v7x
            vmem_limit_bytes=vmem_limit),
    )(x, w1, w2, wh, b1, b2, bh)

    mean = out[:, :A]
    value = out[:, A:A + 1]
    std_row = jnp.exp(log_std)   # (1, A); broadcast lazily at the consumer
    return mean, std_row, value


def init_params(key, input_dim, output_dim, hidden_dim):
    """Deterministic init mimicking PyTorch nn.Linear (uniform +-1/sqrt(fan_in)),
    in PyTorch-equivalent (but transposed) layout."""
    def linear(k, fan_in, fan_out):
        kw, kb = jax.random.split(k)
        bound = 1.0 / jnp.sqrt(fan_in)
        w = jax.random.uniform(kw, (fan_in, fan_out), jnp.float32, -bound, bound)
        b = jax.random.uniform(kb, (fan_out,), jnp.float32, -bound, bound)
        return w, b

    k1, k2, k3, k4 = jax.random.split(key, 4)
    w1, b1 = linear(k1, input_dim, hidden_dim)
    w2, b2 = linear(k2, hidden_dim, hidden_dim)
    wm, bm = linear(k3, hidden_dim, output_dim)
    wv, bv = linear(k4, hidden_dim, 1)
    log_std = jnp.zeros((1, output_dim), jnp.float32)   # nn.Parameter(zeros)
    return dict(w1=w1, b1=b1.reshape(1, -1), w2=w2, b2=b2.reshape(1, -1),
                wm=wm, bm=bm.reshape(1, -1), wv=wv, bv=bv.reshape(1, -1),
                log_std=log_std)


def pack_params(p):
    """One-time packing into the kernel's lane-padded, fused layout.

    Hidden dim is zero-padded to a multiple of 128 (tanh(0)=0 + zero weight
    rows/cols -> exact); the head packs [policy_mean | value | zeros]."""
    in_dim, H = p["w1"].shape
    A = p["wm"].shape[1]
    Hp = _round_up(H, _LANE)
    P = _round_up(A + 1, _LANE)
    wdt = jnp.bfloat16 if USE_BF16_MATMUL else jnp.float32

    w1 = jnp.zeros((in_dim, Hp), jnp.float32).at[:, :H].set(p["w1"])
    w2 = jnp.zeros((Hp, Hp), jnp.float32).at[:H, :H].set(p["w2"])
    wh = jnp.zeros((Hp, P), jnp.float32)
    wh = wh.at[:H, :A].set(p["wm"]).at[:H, A:A + 1].set(p["wv"])

    b1 = jnp.zeros((1, Hp), jnp.float32).at[0, :H].set(p["b1"][0])
    b2 = jnp.zeros((1, Hp), jnp.float32).at[0, :H].set(p["b2"][0])
    bh = jnp.zeros((1, P), jnp.float32)
    bh = bh.at[0, :A].set(p["bm"][0]).at[0, A:A + 1].set(p["bv"][0])

    return dict(w1=w1.astype(wdt), w2=w2.astype(wdt), wh=wh.astype(wdt),
                b1=b1, b2=b2, bh=bh, log_std=p["log_std"])


def reference_forward(x, p):
    """Pure-JAX reference (matches the PyTorch module)."""
    h1 = jnp.tanh(x @ p["w1"] + p["b1"])
    h2 = jnp.tanh(h1 @ p["w2"] + p["b2"])
    mean = h2 @ p["wm"] + p["bm"]
    std = jnp.broadcast_to(jnp.exp(p["log_std"]), mean.shape)
    value = h2 @ p["wv"] + p["bv"]
    return mean, std, value


if __name__ == "__main__":
    INPUT_DIM, OUTPUT_DIM, HIDDEN_DIM = 16, 4, 64

    key = jax.random.PRNGKey(0)
    kx1, kx2, kp = jax.random.split(key, 3)
    raw = init_params(kp, INPUT_DIM, OUTPUT_DIM, HIDDEN_DIM)
    packed = pack_params(raw)

    # B=8 exercises the single-block path; B=64 exercises the >=2-step
    # batch grid (v7x megacore path).
    for B, kk in ((8, kx1), (64, kx2)):
        x = jax.random.normal(kk, (B, INPUT_DIM), jnp.float32)
        mean, std_row, value = ppo_forward(x, packed)
        jax.block_until_ready((mean, std_row, value))

        ref_mean, ref_std, ref_value = reference_forward(x, raw)
        std = jnp.broadcast_to(std_row, ref_mean.shape)
        assert jnp.allclose(mean, ref_mean, atol=1e-5), "mean mismatch"
        assert jnp.allclose(std, ref_std, atol=1e-5), "std mismatch"
        assert jnp.allclose(value, ref_value, atol=1e-5), "value mismatch"

    print("KERNEL_OK")
</pallas_src>

<mosaic_0001>
module attributes {stable_mosaic.version = 11 : i64} {
  func.func @_ppo_kernel(%arg0: i32, %arg1: memref<8x16xf32, #tpu.memory_space<vmem>>, %arg2: memref<16x128xf32, #tpu.memory_space<vmem>>, %arg3: memref<128x128xf32, #tpu.memory_space<vmem>>, %arg4: memref<128x128xf32, #tpu.memory_space<vmem>>, %arg5: memref<1x128xf32, #tpu.memory_space<vmem>>, %arg6: memref<1x128xf32, #tpu.memory_space<vmem>>, %arg7: memref<1x128xf32, #tpu.memory_space<vmem>>, %arg8: memref<8x128xf32, #tpu.memory_space<vmem>>) attributes {dimension_semantics = [#tpu.dimension_semantics<parallel>], iteration_bounds = array<i64: 1>, scalar_prefetch = 0 : i64, scratch_operands = 0 : i64, tpu.core_type = #tpu.core_type<tc>, window_params = [{transform_indices = @transform_0, window_bounds = array<i64: 8, 16>}, {pipeline_mode = #tpu.pipeline_mode<synchronous>, transform_indices = @transform_1, window_bounds = array<i64: 16, 128>}, {pipeline_mode = #tpu.pipeline_mode<synchronous>, transform_indices = @transform_2, window_bounds = array<i64: 128, 128>}, {pipeline_mode = #tpu.pipeline_mode<synchronous>, transform_indices = @transform_3, window_bounds = array<i64: 128, 128>}, {pipeline_mode = #tpu.pipeline_mode<synchronous>, transform_indices = @transform_4, window_bounds = array<i64: 1, 128>}, {pipeline_mode = #tpu.pipeline_mode<synchronous>, transform_indices = @transform_5, window_bounds = array<i64: 1, 128>}, {pipeline_mode = #tpu.pipeline_mode<synchronous>, transform_indices = @transform_6, window_bounds = array<i64: 1, 128>}, {transform_indices = @transform_7, window_bounds = array<i64: 8, 128>}]} {
    %c0 = arith.constant 0 : index
    %c0_0 = arith.constant 0 : index
    %0 = vector.load %arg1[%c0, %c0_0] : memref<8x16xf32, #tpu.memory_space<vmem>>, vector<8x16xf32>
    %c0_1 = arith.constant 0 : index
    %c0_2 = arith.constant 0 : index
    %1 = vector.load %arg2[%c0_1, %c0_2] : memref<16x128xf32, #tpu.memory_space<vmem>>, vector<16x128xf32>
    %cst = arith.constant dense<0.000000e+00> : vector<8x128xf32>
    %2 = tpu.matmul %0, %1, %cst {dimension_numbers = #tpu.dot_dimension_numbers<[1], [0], [0], [1], [0, 0, 1, 1], [], []>} : vector<8x16xf32>, vector<16x128xf32>, vector<8x128xf32> -> vector<8x128xf32>
    %c0_3 = arith.constant 0 : index
    %c0_4 = arith.constant 0 : index
    %3 = vector.load %arg5[%c0_3, %c0_4] : memref<1x128xf32, #tpu.memory_space<vmem>>, vector<1x128xf32>
    %4 = vector.broadcast %3 : vector<1x128xf32> to vector<8x128xf32>
    %5 = arith.addf %2, %4 : vector<8x128xf32>
    %6 = math.tanh %5 : vector<8x128xf32>
    %c0_5 = arith.constant 0 : index
    %c0_6 = arith.constant 0 : index
    %7 = vector.load %arg3[%c0_5, %c0_6] : memref<128x128xf32, #tpu.memory_space<vmem>>, vector<128x128xf32>
    %cst_7 = arith.constant dense<0.000000e+00> : vector<8x128xf32>
    %8 = tpu.matmul %6, %7, %cst_7 {dimension_numbers = #tpu.dot_dimension_numbers<[1], [0], [0], [1], [0, 0, 1, 1], [], []>} : vector<8x128xf32>, vector<128x128xf32>, vector<8x128xf32> -> vector<8x128xf32>
    %c0_8 = arith.constant 0 : index
    %c0_9 = arith.constant 0 : index
    %9 = vector.load %arg6[%c0_8, %c0_9] : memref<1x128xf32, #tpu.memory_space<vmem>>, vector<1x128xf32>
    %10 = vector.broadcast %9 : vector<1x128xf32> to vector<8x128xf32>
    %11 = arith.addf %8, %10 : vector<8x128xf32>
    %12 = math.tanh %11 : vector<8x128xf32>
    %c0_10 = arith.constant 0 : index
    %c0_11 = arith.constant 0 : index
    %13 = vector.load %arg4[%c0_10, %c0_11] : memref<128x128xf32, #tpu.memory_space<vmem>>, vector<128x128xf32>
    %cst_12 = arith.constant dense<0.000000e+00> : vector<8x128xf32>
    %14 = tpu.matmul %12, %13, %cst_12 {dimension_numbers = #tpu.dot_dimension_numbers<[1], [0], [0], [1], [0, 0, 1, 1], [], []>} : vector<8x128xf32>, vector<128x128xf32>, vector<8x128xf32> -> vector<8x128xf32>
    %c0_13 = arith.constant 0 : index
    %c0_14 = arith.constant 0 : index
    %15 = vector.load %arg7[%c0_13, %c0_14] : memref<1x128xf32, #tpu.memory_space<vmem>>, vector<1x128xf32>
    %16 = vector.broadcast %15 : vector<1x128xf32> to vector<8x128xf32>
    %17 = arith.addf %14, %16 : vector<8x128xf32>
    %c0_15 = arith.constant 0 : index
    %c0_16 = arith.constant 0 : index
    %18 = vector.load %arg8[%c0_15, %c0_16] : memref<8x128xf32, #tpu.memory_space<vmem>>, vector<8x128xf32>
    tpu.vector_store %arg8[%c0_15, %c0_16], %17 {strides = array<i32>} : memref<8x128xf32, #tpu.memory_space<vmem>>, vector<8x128xf32>,
    return
  }
  func.func @transform_0(%arg0: i32) -> (i32, i32) {
    %c0_i32 = arith.constant 0 : i32
    %c0_i32_0 = arith.constant 0 : i32
    return %arg0, %c0_i32 : i32, i32
  }
  func.func @transform_1(%arg0: i32) -> (i32, i32) {
    %c0_i32 = arith.constant 0 : i32
    %c0_i32_0 = arith.constant 0 : i32
    %c0_i32_1 = arith.constant 0 : i32
    return %c0_i32, %c0_i32_0 : i32, i32
  }
  func.func @transform_2(%arg0: i32) -> (i32, i32) {
    %c0_i32 = arith.constant 0 : i32
    %c0_i32_0 = arith.constant 0 : i32
    %c0_i32_1 = arith.constant 0 : i32
    return %c0_i32, %c0_i32_0 : i32, i32
  }
  func.func @transform_3(%arg0: i32) -> (i32, i32) {
    %c0_i32 = arith.constant 0 : i32
    %c0_i32_0 = arith.constant 0 : i32
    %c0_i32_1 = arith.constant 0 : i32
    return %c0_i32, %c0_i32_0 : i32, i32
  }
  func.func @transform_4(%arg0: i32) -> (i32, i32) {
    %c0_i32 = arith.constant 0 : i32
    %c0_i32_0 = arith.constant 0 : i32
    %c0_i32_1 = arith.constant 0 : i32
    return %c0_i32, %c0_i32_0 : i32, i32
  }
  func.func @transform_5(%arg0: i32) -> (i32, i32) {
    %c0_i32 = arith.constant 0 : i32
    %c0_i32_0 = arith.constant 0 : i32
    %c0_i32_1 = arith.constant 0 : i32
    return %c0_i32, %c0_i32_0 : i32, i32
  }
  func.func @transform_6(%arg0: i32) -> (i32, i32) {
    %c0_i32 = arith.constant 0 : i32
    %c0_i32_0 = arith.constant 0 : i32
    %c0_i32_1 = arith.constant 0 : i32
    return %c0_i32, %c0_i32_0 : i32, i32
  }
  func.func @transform_7(%arg0: i32) -> (i32, i32) {
    %c0_i32 = arith.constant 0 : i32
    %c0_i32_0 = arith.constant 0 : i32
    return %arg0, %c0_i32 : i32, i32
  }
}

</mosaic_0001>

<llo_original>
// kernel: ppo_forward.1
$region0: #{ppo_forward.1}
  #allocation0 [shape = 'u32[]', space=smem, size = 0x4, offset = 0x4, fixed_abs, tag = 'smem constant byte address 0x4 - core index']
  #allocation1 [shape = 'u32[144,128]{1,0:T(1,128)}', space=vmem, size = 0x12000, scoped, tag = 'internal scratch']
  %s0 = inlined_call_operand.hbm [shape: f32[8,16], index: 0, kind: input, shape index: {}]
  %s1 = inlined_call_operand.hbm [shape: f32[16,128], index: 1, kind: input, shape index: {}]
  %s2 = inlined_call_operand.hbm [shape: f32[128,128], index: 2, kind: input, shape index: {}]
  %s3 = inlined_call_operand.hbm [shape: f32[128,128], index: 3, kind: input, shape index: {}]
  %s4 = inlined_call_operand.vmem [shape: f32[1,128], index: 4, kind: input, shape index: {}]
  %s5 = inlined_call_operand.vmem [shape: f32[1,128], index: 5, kind: input, shape index: {}]
  %s6 = inlined_call_operand.vmem [shape: f32[1,128], index: 6, kind: input, shape index: {}]
  %s7 = inlined_call_operand.vmem [shape: f32[8,128], index: 7, kind: output, shape index: {}]
  %s8 = sld [smem:[#allocation0]]
  $region54: #{ppo_forward.1} parent=0
    _
  %s10 = ssub.s32 1, %s8
  %s11 = scalar_select 0, %s10, %s8
  $region1: #{ppo_forward.1} parent=0
    #allocation2 [shape = 'u8[4096]{0}', space=vmem, size = 0x1000, scoped, tag = 'input window, operand 0, single buffered']
    #allocation3 [shape = 's32[1]{0}', space=sflag, size = 0x4, scoped, tag = 'scoped memory for ppo_forward.1']
    #allocation4 [shape = 'u8[8192]{0}', space=vmem, size = 0x2000, scoped, tag = 'input window, operand 1, single buffered']
    #allocation5 [shape = 's32[1]{0}', space=sflag, size = 0x4, scoped, tag = 'scoped memory for ppo_forward.1']
    #allocation6 [shape = 'u8[65536]{0}', space=vmem, size = 0x10000, scoped, tag = 'input window, operand 2, single buffered']
    #allocation7 [shape = 'u8[65536]{0}', space=vmem, size = 0x10000, scoped, tag = 'input window, operand 3, single buffered']
    #allocation8 [shape = 's32[1]{0}', space=sflag, size = 0x4, scoped, tag = 'scoped memory for ppo_forward.1']
    %12 = vsyncpa [#allocation3], 0
    %13 = vsyncpa [#allocation5], 0
    %14 = vsyncpa [#allocation8], 0
    // Predicated region
    $region2: #{ppo_forward.1} parent=1 // pred_check
      _
    $region3: #{ppo_forward.1} parent=1 // pred_check_branch
      %16 = sbr.rel (0) target = $region5
    $region4: #{ppo_forward.1} parent=1 // pred_region
      %s18 = ssub.s32 128, 128
      %19 = vsyncadd [#allocation3], %s18
      %s21 = sshll.u32 [#allocation2], 4
      %s22 = int_to_ptr.vmem [resolvable:$true] %s21
      %24 = dma.hbm_to_vmem [thread:$0]  %s0, 128, %s22, [#allocation3]
    $region5: #{ppo_forward.1} parent=1 // pred_fallthru
      _
    // Predicated region
    $region6: #{ppo_forward.1} parent=1 // pred_check
      _
    $region7: #{ppo_forward.1} parent=1 // pred_check_branch
      %26 = sbr.rel (0) target = $region9
    $region8: #{ppo_forward.1} parent=1 // pred_region
      %s28 = ssub.s32 256, 256
      %29 = vsyncadd [#allocation5], %s28
      %s30 = sshll.u32 [#allocation4], 4
      %s31 = int_to_ptr.vmem [resolvable:$true] %s30
      %36 = dma.hbm_to_vmem [thread:$0]  %s1, 256, %s31, [#allocation5], 128, 128, 8
    $region9: #{ppo_forward.1} parent=1 // pred_fallthru
      _
    // Predicated region
    $region10: #{ppo_forward.1} parent=1 // pred_check
      _
    $region11: #{ppo_forward.1} parent=1 // pred_check_branch
      %38 = sbr.rel (0) target = $region13
    $region12: #{ppo_forward.1} parent=1 // pred_region
      %s40 = ssub.s32 2048, 2048
      %41 = vsyncadd [#allocation5], %s40
      %s42 = sshll.u32 [#allocation6], 4
      %s43 = int_to_ptr.vmem [resolvable:$true] %s42
      %48 = dma.hbm_to_vmem [thread:$0]  %s2, 2048, %s43, [#allocation5], 128, 128, 8
    $region13: #{ppo_forward.1} parent=1 // pred_fallthru
      _
    // Predicated region
    $region14: #{ppo_forward.1} parent=1 // pred_check
      _
    $region15: #{ppo_forward.1} parent=1 // pred_check_branch
      %50 = sbr.rel (0) target = $region17
    $region16: #{ppo_forward.1} parent=1 // pred_region
      %s52 = ssub.s32 2048, 2048
      %53 = vsyncadd [#allocation8], %s52
      %s54 = sshll.u32 [#allocation7], 4
      %s55 = int_to_ptr.vmem [resolvable:$true] %s54
      %60 = dma.hbm_to_vmem [thread:$0]  %s3, 2048, %s55, [#allocation8], 128, 128, 8
    $region17: #{ppo_forward.1} parent=1 // pred_fallthru
      _
    // Predicated region
    $region18: #{ppo_forward.1} parent=1 // pred_check
      _
    $region19: #{ppo_forward.1} parent=1 // pred_check_branch
      %62 = sbr.rel (0) target = $region21
    $region20: #{ppo_forward.1} parent=1 // pred_region
      _
    $region21: #{ppo_forward.1} parent=1 // pred_fallthru
      _
    // Predicated region
    $region22: #{ppo_forward.1} parent=1 // pred_check
      _
    $region23: #{ppo_forward.1} parent=1 // pred_check_branch
      %64 = sbr.rel (0) target = $region25
    $region24: #{ppo_forward.1} parent=1 // pred_region
      _
    $region25: #{ppo_forward.1} parent=1 // pred_fallthru
      _
    // Predicated region
    $region26: #{ppo_forward.1} parent=1 // pred_check
      _
    $region27: #{ppo_forward.1} parent=1 // pred_check_branch
      %66 = sbr.rel (0) target = $region29
    $region28: #{ppo_forward.1} parent=1 // pred_region
      _
    $region29: #{ppo_forward.1} parent=1 // pred_fallthru
      _
    // Predicated region
    $region30: #{ppo_forward.1} parent=1 // pred_check
      _
    $region31: #{ppo_forward.1} parent=1 // pred_check_branch
      %68 = sbr.rel (0) target = $region33
    $region32: #{ppo_forward.1} parent=1 // pred_region
      %69 = dma.done [#allocation3], 128
    $region33: #{ppo_forward.1} parent=1 // pred_fallthru
      _
    // Predicated region
    $region34: #{ppo_forward.1} parent=1 // pred_check
      _
    $region35: #{ppo_forward.1} parent=1 // pred_check_branch
      %71 = sbr.rel (0) target = $region37
    $region36: #{ppo_forward.1} parent=1 // pred_region
      %72 = dma.done [#allocation5], 256
    $region37: #{ppo_forward.1} parent=1 // pred_fallthru
      _
    // Predicated region
    $region38: #{ppo_forward.1} parent=1 // pred_check
      _
    $region39: #{ppo_forward.1} parent=1 // pred_check_branch
      %74 = sbr.rel (0) target = $region41
    $region40: #{ppo_forward.1} parent=1 // pred_region
      %75 = dma.done [#allocation5], 2048
    $region41: #{ppo_forward.1} parent=1 // pred_fallthru
      _
    // Predicated region
    $region42: #{ppo_forward.1} parent=1 // pred_check
      _
    $region43: #{ppo_forward.1} parent=1 // pred_check_branch
      %77 = sbr.rel (0) target = $region45
    $region44: #{ppo_forward.1} parent=1 // pred_region
      %78 = dma.done [#allocation8], 2048
    $region45: #{ppo_forward.1} parent=1 // pred_fallthru
      _
    %v79 = vld [vmem:[#allocation2] sm:$0xff]
    %v80 = vld [vmem:[#allocation4] sm:$0xff]
    %v81 = vld [vmem:[#allocation4 + $0x8] sm:$0xff]
    %v82 = vld [vmem:[%s4] sm:$0x1]
    %v84 = vlaneseq
    %v85 = vshrl.u32 %v84, 7
    %v86 = vsub.s32 0, %v85
    %v87 = vrot.slane %v82, %v86
    %vm89 = vcmask 130048
    %v91 = vsel %vm89, %v79, 0
    %93 = vmatprep.subr.mxu0 0.0
    %94 = vmatpush1.msra.mxu0 %v80
    %95 = vmatprep.subr.mxu0 0.0
    %96 = vmatpush1.msra.mxu0 %v81
    %97 = vmatprep.subr.mxu0 0.0
    %98 = vmatpush1.msra.mxu0 0.0
    %99 = vmatprep.subr.mxu0 0.0
    %100 = vmatpush1.msra.mxu0 0.0
    %101 = vmatprep.subr.mxu0 0.0
    %102 = vmatpush1.msra.mxu0 0.0
    %103 = vmatprep.subr.mxu0 0.0
    %104 = vmatpush1.msra.mxu0 0.0
    %105 = vmatprep.subr.mxu0 0.0
    %106 = vmatpush1.msra.mxu0 0.0
    %107 = vmatprep.subr.mxu0 0.0
    %108 = vmatpush1.msra.mxu0 0.0
    %109 = vmatprep.subr.mxu0 0.0
    %110 = vmatpush1.msra.mxu0 0.0
    %111 = vmatprep.subr.mxu0 0.0
    %112 = vmatpush1.msra.mxu0 0.0
    %113 = vmatprep.subr.mxu0 0.0
    %114 = vmatpush1.msra.mxu0 0.0
    %115 = vmatprep.subr.mxu0 0.0
    %116 = vmatpush1.msra.mxu0 0.0
    %117 = vmatprep.subr.mxu0 0.0
    %118 = vmatpush1.msra.mxu0 0.0
    %119 = vmatprep.subr.mxu0 0.0
    %120 = vmatpush1.msra.mxu0 0.0
    %121 = vmatprep.subr.mxu0 0.0
    %122 = vmatpush1.msra.mxu0 0.0
    %123 = vmatprep.subr.mxu0 0.0
    %124 = vmatpush1.msra.mxu0 0.0
    %125 = vmatprep.subr.mxu0 0.0
    %126 = vmatpush1.msra.mxu0 0.0
    %127 = vmatprep.subr.mxu0 0.0
    %128 = vmatpush1.msra.mxu0 0.0
    %129 = vmatprep.subr.mxu0 0.0
    %130 = vmatpush1.msra.mxu0 0.0
    %131 = vmatprep.subr.mxu0 0.0
    %132 = vmatpush1.msra.mxu0 0.0
    %133 = vmatprep.subr.mxu0 0.0
    %134 = vmatpush1.msra.mxu0 0.0
    %135 = vmatprep.subr.mxu0 0.0
    %136 = vmatpush1.msra.mxu0 0.0
    %137 = vmatprep.subr.mxu0 0.0
    %138 = vmatpush1.msra.mxu0 0.0
    %139 = vmatprep.subr.mxu0 0.0
    %140 = vmatpush1.msra.mxu0 0.0
    %141 = vmatprep.subr.mxu0 0.0
    %142 = vmatpush1.msra.mxu0 0.0
    %143 = vmatprep.subr.mxu0 0.0
    %144 = vmatpush1.msra.mxu0 0.0
    %145 = vmatprep.subr.mxu0 0.0
    %146 = vmatpush1.msra.mxu0 0.0
    %147 = vmatprep.subr.mxu0 0.0
    %148 = vmatpush1.msra.mxu0 0.0
    %149 = vmatprep.subr.mxu0 0.0
    %150 = vmatpush1.msra.mxu0 0.0
    %151 = vmatprep.subr.mxu0 0.0
    %152 = vmatpush1.msra.mxu0 0.0
    %153 = vmatprep.subr.mxu0 0.0
    %154 = vmatpush1.msra.mxu0 0.0
    %155 = vmatprep.subr.mxu0 0.0
    %156 = vmatpush1.msra.mxu0 0.0
    %157 = vmatprep.mubr.f32.mxu0 0.0
    %158 = vmatmul.mubr.f32.gmra.mrb[0].mxu0 %v91
    %v159 = vpop.f32.mrb[0].mxu0
    %v160 = vadd.f32 %v87, %v159
    %v161 = vpop.f32.mrb[0].mxu0
    %162 = vdwg.mxu0
    %v163 = vtanh.pop %v160
    %v164 = vld [vmem:[#allocation6] sm:$0xff]
    %v165 = vld [vmem:[#allocation6 + $0x8] sm:$0xff]
    %v166 = vld [vmem:[#allocation6 + $0x10] sm:$0xff]
    %v167 = vld [vmem:[#allocation6 + $0x18] sm:$0xff]
    %v168 = vld [vmem:[#allocation6 + $0x20] sm:$0xff]
    %v169 = vld [vmem:[#allocation6 + $0x28] sm:$0xff]
    %v170 = vld [vmem:[#allocation6 + $0x30] sm:$0xff]
    %v171 = vld [vmem:[#allocation6 + $0x38] sm:$0xff]
    %v172 = vld [vmem:[#allocation6 + $0x40] sm:$0xff]
    %v173 = vld [vmem:[#allocation6 + $0x48] sm:$0xff]
    %v174 = vld [vmem:[#allocation6 + $0x50] sm:$0xff]
    %v175 = vld [vmem:[#allocation6 + $0x58] sm:$0xff]
    %v176 = vld [vmem:[#allocation6 + $0x60] sm:$0xff]
    %v177 = vld [vmem:[#allocation6 + $0x68] sm:$0xff]
    %v178 = vld [vmem:[#allocation6 + $0x70] sm:$0xff]
    %v179 = vld [vmem:[#allocation6 + $0x78] sm:$0xff]
    %v180 = vld [vmem:[%s5] sm:$0x1]
    %v182 = vlaneseq
    %v183 = vshrl.u32 %v182, 7
    %v184 = vsub.s32 0, %v183
    %v185 = vrot.slane %v180, %v184
    %187 = vmatprep.subr.mxu0 0.0
    %188 = vmatpush1.msra.mxu0 %v164
    %189 = vmatprep.subr.mxu0 0.0
    %190 = vmatpush1.msra.mxu0 %v165
    %191 = vmatprep.subr.mxu0 0.0
    %192 = vmatpush1.msra.mxu0 %v166
    %193 = vmatprep.subr.mxu0 0.0
    %194 = vmatpush1.msra.mxu0 %v167
    %195 = vmatprep.subr.mxu0 0.0
    %196 = vmatpush1.msra.mxu0 %v168
    %197 = vmatprep.subr.mxu0 0.0
    %198 = vmatpush1.msra.mxu0 %v169
    %199 = vmatprep.subr.mxu0 0.0
    %200 = vmatpush1.msra.mxu0 %v170
    %201 = vmatprep.subr.mxu0 0.0
    %202 = vmatpush1.msra.mxu0 %v171
    %203 = vmatprep.subr.mxu0 0.0
    %204 = vmatpush1.msra.mxu0 %v172
    %205 = vmatprep.subr.mxu0 0.0
    %206 = vmatpush1.msra.mxu0 %v173
    %207 = vmatprep.subr.mxu0 0.0
    %208 = vmatpush1.msra.mxu0 %v174
    %209 = vmatprep.subr.mxu0 0.0
    %210 = vmatpush1.msra.mxu0 %v175
    %211 = vmatprep.subr.mxu0 0.0
    %212 = vmatpush1.msra.mxu0 %v176
    %213 = vmatprep.subr.mxu0 0.0
    %214 = vmatpush1.msra.mxu0 %v177
    %215 = vmatprep.subr.mxu0 0.0
    %216 = vmatpush1.msra.mxu0 %v178
    %217 = vmatprep.subr.mxu0 0.0
    %218 = vmatpush1.msra.mxu0 %v179
    %219 = vmatprep.subr.mxu0 0.0
    %220 = vmatpush1.msra.mxu0 0.0
    %221 = vmatprep.subr.mxu0 0.0
    %222 = vmatpush1.msra.mxu0 0.0
    %223 = vmatprep.subr.mxu0 0.0
    %224 = vmatpush1.msra.mxu0 0.0
    %225 = vmatprep.subr.mxu0 0.0
    %226 = vmatpush1.msra.mxu0 0.0
    %227 = vmatprep.subr.mxu0 0.0
    %228 = vmatpush1.msra.mxu0 0.0
    %229 = vmatprep.subr.mxu0 0.0
    %230 = vmatpush1.msra.mxu0 0.0
    %231 = vmatprep.subr.mxu0 0.0
    %232 = vmatpush1.msra.mxu0 0.0
    %233 = vmatprep.subr.mxu0 0.0
    %234 = vmatpush1.msra.mxu0 0.0
    %235 = vmatprep.subr.mxu0 0.0
    %236 = vmatpush1.msra.mxu0 0.0
    %237 = vmatprep.subr.mxu0 0.0
    %238 = vmatpush1.msra.mxu0 0.0
    %239 = vmatprep.subr.mxu0 0.0
    %240 = vmatpush1.msra.mxu0 0.0
    %241 = vmatprep.subr.mxu0 0.0
    %242 = vmatpush1.msra.mxu0 0.0
    %243 = vmatprep.subr.mxu0 0.0
    %244 = vmatpush1.msra.mxu0 0.0
    %245 = vmatprep.subr.mxu0 0.0
    %246 = vmatpush1.msra.mxu0 0.0
    %247 = vmatprep.subr.mxu0 0.0
    %248 = vmatpush1.msra.mxu0 0.0
    %249 = vmatprep.subr.mxu0 0.0
    %250 = vmatpush1.msra.mxu0 0.0
    %251 = vmatprep.mubr.f32.mxu0 0.0
    %252 = vmatmul.mubr.f32.gmra.mrb[0].mxu0 %v163
    %v253 = vpop.f32.mrb[0].mxu0
    %v254 = vadd.f32 %v185, %v253
    %v255 = vpop.f32.mrb[0].mxu0
    %256 = vdwg.mxu0
    %v257 = vtanh.pop %v254
    %v258 = vld [vmem:[#allocation7] sm:$0xff]
    %v259 = vld [vmem:[#allocation7 + $0x8] sm:$0xff]
    %v260 = vld [vmem:[#allocation7 + $0x10] sm:$0xff]
    %v261 = vld [vmem:[#allocation7 + $0x18] sm:$0xff]
    %v262 = vld [vmem:[#allocation7 + $0x20] sm:$0xff]
    %v263 = vld [vmem:[#allocation7 + $0x28] sm:$0xff]
    %v264 = vld [vmem:[#allocation7 + $0x30] sm:$0xff]
    %v265 = vld [vmem:[#allocation7 + $0x38] sm:$0xff]
    %v266 = vld [vmem:[#allocation7 + $0x40] sm:$0xff]
    %v267 = vld [vmem:[#allocation7 + $0x48] sm:$0xff]
    %v268 = vld [vmem:[#allocation7 + $0x50] sm:$0xff]
    %v269 = vld [vmem:[#allocation7 + $0x58] sm:$0xff]
    %v270 = vld [vmem:[#allocation7 + $0x60] sm:$0xff]
    %v271 = vld [vmem:[#allocation7 + $0x68] sm:$0xff]
    %v272 = vld [vmem:[#allocation7 + $0x70] sm:$0xff]
    %v273 = vld [vmem:[#allocation7 + $0x78] sm:$0xff]
    %v274 = vld [vmem:[%s6] sm:$0x1]
    %v276 = vlaneseq
    %v277 = vshrl.u32 %v276, 7
    %v278 = vsub.s32 0, %v277
    %v279 = vrot.slane %v274, %v278
    %281 = vmatprep.subr.mxu0 0.0
    %282 = vmatpush1.msra.mxu0 %v258
    %283 = vmatprep.subr.mxu0 0.0
    %284 = vmatpush1.msra.mxu0 %v259
    %285 = vmatprep.subr.mxu0 0.0
    %286 = vmatpush1.msra.mxu0 %v260
    %287 = vmatprep.subr.mxu0 0.0
    %288 = vmatpush1.msra.mxu0 %v261
    %289 = vmatprep.subr.mxu0 0.0
    %290 = vmatpush1.msra.mxu0 %v262
    %291 = vmatprep.subr.mxu0 0.0
    %292 = vmatpush1.msra.mxu0 %v263
    %293 = vmatprep.subr.mxu0 0.0
    %294 = vmatpush1.msra.mxu0 %v264
    %295 = vmatprep.subr.mxu0 0.0
    %296 = vmatpush1.msra.mxu0 %v265
    %297 = vmatprep.subr.mxu0 0.0
    %298 = vmatpush1.msra.mxu0 %v266
    %299 = vmatprep.subr.mxu0 0.0
    %300 = vmatpush1.msra.mxu0 %v267
    %301 = vmatprep.subr.mxu0 0.0
    %302 = vmatpush1.msra.mxu0 %v268
    %303 = vmatprep.subr.mxu0 0.0
    %304 = vmatpush1.msra.mxu0 %v269
    %305 = vmatprep.subr.mxu0 0.0
    %306 = vmatpush1.msra.mxu0 %v270
    %307 = vmatprep.subr.mxu0 0.0
    %308 = vmatpush1.msra.mxu0 %v271
    %309 = vmatprep.subr.mxu0 0.0
    %310 = vmatpush1.msra.mxu0 %v272
    %311 = vmatprep.subr.mxu0 0.0
    %312 = vmatpush1.msra.mxu0 %v273
    %313 = vmatprep.subr.mxu0 0.0
    %314 = vmatpush1.msra.mxu0 0.0
    %315 = vmatprep.subr.mxu0 0.0
    %316 = vmatpush1.msra.mxu0 0.0
    %317 = vmatprep.subr.mxu0 0.0
    %318 = vmatpush1.msra.mxu0 0.0
    %319 = vmatprep.subr.mxu0 0.0
    %320 = vmatpush1.msra.mxu0 0.0
    %321 = vmatprep.subr.mxu0 0.0
    %322 = vmatpush1.msra.mxu0 0.0
    %323 = vmatprep.subr.mxu0 0.0
    %324 = vmatpush1.msra.mxu0 0.0
    %325 = vmatprep.subr.mxu0 0.0
    %326 = vmatpush1.msra.mxu0 0.0
    %327 = vmatprep.subr.mxu0 0.0
    %328 = vmatpush1.msra.mxu0 0.0
    %329 = vmatprep.subr.mxu0 0.0
    %330 = vmatpush1.msra.mxu0 0.0
    %331 = vmatprep.subr.mxu0 0.0
    %332 = vmatpush1.msra.mxu0 0.0
    %333 = vmatprep.subr.mxu0 0.0
    %334 = vmatpush1.msra.mxu0 0.0
    %335 = vmatprep.subr.mxu0 0.0
    %336 = vmatpush1.msra.mxu0 0.0
    %337 = vmatprep.subr.mxu0 0.0
    %338 = vmatpush1.msra.mxu0 0.0
    %339 = vmatprep.subr.mxu0 0.0
    %340 = vmatpush1.msra.mxu0 0.0
    %341 = vmatprep.subr.mxu0 0.0
    %342 = vmatpush1.msra.mxu0 0.0
    %343 = vmatprep.subr.mxu0 0.0
    %344 = vmatpush1.msra.mxu0 0.0
    %345 = vmatprep.mubr.f32.mxu0 0.0
    %346 = vmatmul.mubr.f32.gmra.mrb[0].mxu0 %v257
    %v347 = vpop.f32.mrb[0].mxu0
    %v348 = vadd.f32 %v279, %v347
    %v349 = vpop.f32.mrb[0].mxu0
    %350 = vdwg.mxu0
    %351 = vst [vmem:[%s7] sm:$0xff] %v348
    // Predicated region
    $region46: #{ppo_forward.1} parent=1 // pred_check
      _
    $region47: #{ppo_forward.1} parent=1 // pred_check_branch
      %353 = sbr.rel (0) target = $region49
    $region48: #{ppo_forward.1} parent=1 // pred_region
      _
    $region49: #{ppo_forward.1} parent=1 // pred_fallthru
      _
    // Predicated region
    $region50: #{ppo_forward.1} parent=1 // pred_check
      _
    $region51: #{ppo_forward.1} parent=1 // pred_check_branch
      %355 = sbr.rel (0) target = $region53
    $region52: #{ppo_forward.1} parent=1 // pred_region
      _
    $region53: #{ppo_forward.1} parent=1 // pred_fallthru
      _
    %356 = vsyncpa [#allocation3], 1
    %357 = vsyncpa [#allocation5], 1
    %358 = vsyncpa [#allocation8], 1

</llo_original>
